<compile_context>
chip_gen: v6e
topology: v6e:2x2x1
jax: 0.10.0
libtpu: 0.0.40
codegen_flags: <defaults>
</compile_context>

<pallas_src>
import math

import numpy as np
import jax
import jax.numpy as jnp
from jax.experimental import pallas as pl
from jax.experimental.pallas import tpu as pltpu


def _gaussian_kernel1d(sigma, order, radius):
    """scipy.ndimage._gaussian_kernel1d, order=0 branch (deterministic)."""
    assert order == 0
    x = np.arange(-radius, radius + 1)
    phi_x = np.exp(-0.5 / (sigma * sigma) * x * x)
    phi_x = phi_x / phi_x.sum()
    return phi_x  # float64


def _folded_weights(sigma, f):
    """(f, f) float64 matrix W with replicate padding folded in.

    out[i] = sum_j W[i, j] * x[j]  ==  conv1d(replicate_pad(x), taps)[i]
    """
    rad = int(4 * sigma + 0.5)
    taps = _gaussian_kernel1d(sigma, 0, rad)
    k_len = 2 * rad + 1
    W = np.zeros((f, f), np.float64)
    for i in range(f):
        for t in range(k_len):
            src = min(max(i + t - rad, 0), f - 1)  # replicate-pad clamp
            W[i, src] += taps[t]
    return W, rad


def _smooth_kernel(x_ref, w_ref, o_ref):
    # x_ref: (tp, L) input rows (L lane-dense when packed)
    # w_ref: (L, L) folded / block-diagonal Gaussian weights
    # o_ref: (tp, L) smoothed output
    acc = jnp.dot(
        x_ref[...].astype(w_ref.dtype),
        w_ref[...],
        preferred_element_type=jnp.float32,
    )
    o_ref[...] = acc.astype(o_ref.dtype)


def gaussian_smooth(x, sigma=3, dim=-1):
    """Matches GaussianSmooth(sigma, dim).forward(x) semantics."""
    orig_dtype = x.dtype
    xt = jnp.swapaxes(x, dim, -1)
    lead_shape = xt.shape[:-1]
    f = xt.shape[-1]
    if xt.size == 0 or f == 0:
        return x

    x2 = xt.reshape(-1, f)  # contiguous reshape (free when dim == -1)
    n_rows = x2.shape[0]

    W, _rad = _folded_weights(sigma, f)  # out_row = x_row @ W.T

    # Lane packing: fold g consecutive signals into one lane-dense row (g*f
    # is a multiple of 128).  Falls back to g=1 (still correct, lane-sparse
    # stores) when the packing doesn't divide or would blow up the weights.
    g = 128 // math.gcd(f, 128)
    if g > 1 and (n_rows % g != 0 or g * f > 512):
        g = 1
    L = g * f
    if g > 1:
        Wmat = np.kron(np.eye(g, dtype=np.float64), W.T)  # (L, L) block-diag
        xk = x2.reshape(n_rows // g, L)
    else:
        Wmat = W.T
        xk = x2
    n_p = xk.shape[0]

    # bf16 inputs keep bf16 MXU operands (f32 accumulate); otherwise f32.
    compute_dtype = jnp.bfloat16 if orig_dtype == jnp.bfloat16 else jnp.float32
    w_j = jnp.asarray(Wmat.astype(np.float32), dtype=compute_dtype)

    # Row-tile sizing: big tiles (amortize per-step overhead), ~4 MiB/block
    # budget so double-buffered in+out stays far under the v7x VMEM limit.
    # TODO(synk): very large f (weights > VMEM) would need f-tiling with a
    # 2*rad halo; not required for this module's typical shapes.
    bytes_per_row = L * 4
    tp_cap = max(8, min(2048, (4 * 1024 * 1024) // max(bytes_per_row, 4)))
    tp_cap = (tp_cap // 8) * 8
    tp = n_p if n_p <= tp_cap else tp_cap
    grid = (n_p + tp - 1) // tp

    out = pl.pallas_call(
        _smooth_kernel,
        out_shape=jax.ShapeDtypeStruct((n_p, L), orig_dtype),
        grid=(grid,),
        in_specs=[
            pl.BlockSpec((tp, L), lambda i: (i, 0)),   # data rows
            pl.BlockSpec((L, L), lambda i: (0, 0)),    # weights (resident)
        ],
        out_specs=pl.BlockSpec((tp, L), lambda i: (i, 0)),
        compiler_params=pltpu.CompilerParams(
            dimension_semantics=("parallel",),
        ),
    )(xk, w_j)

    out = out.reshape(n_rows, f).reshape(*lead_shape, f)
    out = jnp.swapaxes(out, -1, dim)
    return out


def _numpy_reference(x_np, sigma, dim):
    rad = int(4 * sigma + 0.5)
    taps = _gaussian_kernel1d(sigma, 0, rad)
    xt = np.swapaxes(np.asarray(x_np, dtype=np.float64), dim, -1)
    lead = xt.shape[:-1]
    f = xt.shape[-1]
    rows = xt.reshape(-1, f)
    rows_pad = np.pad(rows, ((0, 0), (rad, rad)), mode="edge")
    ref = np.stack(
        [np.convolve(row, taps[::-1], mode="valid") for row in rows_pad]
    ).reshape(*lead, f)
    return np.swapaxes(ref, -1, dim)


if __name__ == "__main__":
    key = jax.random.PRNGKey(0)

    # Main case: (2, 4, 16, 16), smooth along last dim (lane-packed MXU path).
    x = jax.random.normal(key, (2, 4, 16, 16), dtype=jnp.float32)
    y = gaussian_smooth(x, sigma=3, dim=-1)
    y = jax.block_until_ready(y)
    assert y.shape == x.shape and y.dtype == x.dtype
    ref = _numpy_reference(np.asarray(x), sigma=3, dim=-1)
    np.testing.assert_allclose(np.asarray(y), ref, atol=1e-5, rtol=1e-4)

    # Secondary case: non-last dim and a width that exercises the g=1
    # fallback path (f = 20).
    k2 = jax.random.PRNGKey(1)
    x2 = jax.random.normal(k2, (3, 20, 5), dtype=jnp.float32)
    y2 = gaussian_smooth(x2, sigma=3, dim=1)
    y2 = jax.block_until_ready(y2)
    assert y2.shape == x2.shape and y2.dtype == x2.dtype
    ref2 = _numpy_reference(np.asarray(x2), sigma=3, dim=1)
    np.testing.assert_allclose(np.asarray(y2), ref2, atol=1e-5, rtol=1e-4)

    print("KERNEL_OK")
</pallas_src>

<mosaic_0001>
module attributes {stable_mosaic.version = 11 : i64} {
  func.func @_smooth_kernel(%arg0: i32, %arg1: memref<16x128xf32, #tpu.memory_space<vmem>>, %arg2: memref<128x128xf32, #tpu.memory_space<vmem>>, %arg3: memref<16x128xf32, #tpu.memory_space<vmem>>) attributes {dimension_semantics = [#tpu.dimension_semantics<parallel>], iteration_bounds = array<i64: 1>, scalar_prefetch = 0 : i64, scratch_operands = 0 : i64, tpu.core_type = #tpu.core_type<tc>, window_params = [{transform_indices = @transform_0, window_bounds = array<i64: 16, 128>}, {pipeline_mode = #tpu.pipeline_mode<synchronous>, transform_indices = @transform_1, window_bounds = array<i64: 128, 128>}, {transform_indices = @transform_2, window_bounds = array<i64: 16, 128>}]} {
    %c0 = arith.constant 0 : index
    %c0_0 = arith.constant 0 : index
    %0 = vector.load %arg1[%c0, %c0_0] : memref<16x128xf32, #tpu.memory_space<vmem>>, vector<16x128xf32>
    %c0_1 = arith.constant 0 : index
    %c0_2 = arith.constant 0 : index
    %1 = vector.load %arg2[%c0_1, %c0_2] : memref<128x128xf32, #tpu.memory_space<vmem>>, vector<128x128xf32>
    %cst = arith.constant dense<0.000000e+00> : vector<16x128xf32>
    %2 = tpu.matmul %0, %1, %cst {dimension_numbers = #tpu.dot_dimension_numbers<[1], [0], [0], [1], [0, 0, 1, 1], [], []>} : vector<16x128xf32>, vector<128x128xf32>, vector<16x128xf32> -> vector<16x128xf32>
    %c0_3 = arith.constant 0 : index
    %c0_4 = arith.constant 0 : index
    %3 = vector.load %arg3[%c0_3, %c0_4] : memref<16x128xf32, #tpu.memory_space<vmem>>, vector<16x128xf32>
    tpu.vector_store %arg3[%c0_3, %c0_4], %2 {strides = array<i32>} : memref<16x128xf32, #tpu.memory_space<vmem>>, vector<16x128xf32>,
    return
  }
  func.func @transform_0(%arg0: i32) -> (i32, i32) {
    %c0_i32 = arith.constant 0 : i32
    %c0_i32_0 = arith.constant 0 : i32
    return %arg0, %c0_i32 : i32, i32
  }
  func.func @transform_1(%arg0: i32) -> (i32, i32) {
    %c0_i32 = arith.constant 0 : i32
    %c0_i32_0 = arith.constant 0 : i32
    %c0_i32_1 = arith.constant 0 : i32
    return %c0_i32, %c0_i32_0 : i32, i32
  }
  func.func @transform_2(%arg0: i32) -> (i32, i32) {
    %c0_i32 = arith.constant 0 : i32
    %c0_i32_0 = arith.constant 0 : i32
    return %arg0, %c0_i32 : i32, i32
  }
}

</mosaic_0001>

<llo_original>
// kernel: tpu_custom_call.1
$region0: #{tpu_custom_call.1}
  #allocation0 [shape = 'u32[]', space=smem, size = 0x4, offset = 0x4, fixed_abs, tag = 'smem constant byte address 0x4 - core index']
  #allocation1 [shape = 'u32[144,128]{1,0:T(1,128)}', space=vmem, size = 0x12000, scoped, tag = 'internal scratch']
  %s0 = inlined_call_operand.hbm [shape: f32[16,128], index: 0, kind: input, shape index: {}]
  %s1 = inlined_call_operand.hbm [shape: f32[128,128], index: 1, kind: input, shape index: {}]
  %s2 = inlined_call_operand.hbm [shape: f32[16,128], index: 2, kind: output, shape index: {}]
  %s3 = sld [smem:[#allocation0]]
  $region26: #{tpu_custom_call.1} parent=0
    _
  %s5 = ssub.s32 1, %s3
  %s6 = scalar_select 0, %s5, %s3
  $region1: #{tpu_custom_call.1} parent=0
    #allocation2 [shape = 'u8[8192]{0}', space=vmem, size = 0x2000, scoped, tag = 'input window, operand 0, single buffered']
    #allocation3 [shape = 's32[1]{0}', space=sflag, size = 0x4, scoped, tag = 'scoped memory for tpu_custom_call.1']
    #allocation4 [shape = 's32[1]{0}', space=sflag, size = 0x4, scoped, tag = 'scoped memory for tpu_custom_call.1']
    #allocation5 [shape = 'u8[65536]{0}', space=vmem, size = 0x10000, scoped, tag = 'input window, operand 1, single buffered']
    #allocation6 [shape = 's32[1]{0}', space=sflag, size = 0x4, scoped, tag = 'scoped memory for tpu_custom_call.1']
    #allocation7 [shape = 'u8[8192]{0}', space=vmem, size = 0x2000, scoped, tag = 'output window, operand 0, single buffered']
    %7 = vsyncpa [#allocation3], 0
    %8 = vsyncpa [#allocation6], 0
    %9 = vsyncpa [#allocation4], 0
    // Predicated region
    $region2: #{tpu_custom_call.1} parent=1 // pred_check
      _
    $region3: #{tpu_custom_call.1} parent=1 // pred_check_branch
      %11 = sbr.rel (0) target = $region5
    $region4: #{tpu_custom_call.1} parent=1 // pred_region
      %s13 = ssub.s32 256, 256
      %14 = vsyncadd [#allocation3], %s13
      %s15 = sshll.u32 [#allocation2], 4
      %s16 = int_to_ptr.vmem [resolvable:$true] %s15
      %21 = dma.hbm_to_vmem [thread:$0]  %s0, 256, %s16, [#allocation3], 128, 128, 8
    $region5: #{tpu_custom_call.1} parent=1 // pred_fallthru
      _
    // Predicated region
    $region6: #{tpu_custom_call.1} parent=1 // pred_check
      _
    $region7: #{tpu_custom_call.1} parent=1 // pred_check_branch
      %23 = sbr.rel (0) target = $region9
    $region8: #{tpu_custom_call.1} parent=1 // pred_region
      %s25 = ssub.s32 2048, 2048
      %26 = vsyncadd [#allocation6], %s25
      %s27 = sshll.u32 [#allocation5], 4
      %s28 = int_to_ptr.vmem [resolvable:$true] %s27
      %33 = dma.hbm_to_vmem [thread:$0]  %s1, 2048, %s28, [#allocation6], 128, 128, 8
    $region9: #{tpu_custom_call.1} parent=1 // pred_fallthru
      _
    // Predicated region
    $region10: #{tpu_custom_call.1} parent=1 // pred_check
      _
    $region11: #{tpu_custom_call.1} parent=1 // pred_check_branch
      %35 = sbr.rel (0) target = $region13
    $region12: #{tpu_custom_call.1} parent=1 // pred_region
      %36 = dma.done [#allocation3], 256
    $region13: #{tpu_custom_call.1} parent=1 // pred_fallthru
      _
    // Predicated region
    $region14: #{tpu_custom_call.1} parent=1 // pred_check
      _
    $region15: #{tpu_custom_call.1} parent=1 // pred_check_branch
      %38 = sbr.rel (0) target = $region17
    $region16: #{tpu_custom_call.1} parent=1 // pred_region
      %39 = dma.done [#allocation6], 2048
    $region17: #{tpu_custom_call.1} parent=1 // pred_fallthru
      _
    %v40 = vld [vmem:[#allocation2] sm:$0xff]
    %v41 = vld [vmem:[#allocation2 + $0x8] sm:$0xff]
    %v42 = vld [vmem:[#allocation5] sm:$0xff]
    %v43 = vld [vmem:[#allocation5 + $0x8] sm:$0xff]
    %v44 = vld [vmem:[#allocation5 + $0x10] sm:$0xff]
    %v45 = vld [vmem:[#allocation5 + $0x18] sm:$0xff]
    %v46 = vld [vmem:[#allocation5 + $0x20] sm:$0xff]
    %v47 = vld [vmem:[#allocation5 + $0x28] sm:$0xff]
    %v48 = vld [vmem:[#allocation5 + $0x30] sm:$0xff]
    %v49 = vld [vmem:[#allocation5 + $0x38] sm:$0xff]
    %v50 = vld [vmem:[#allocation5 + $0x40] sm:$0xff]
    %v51 = vld [vmem:[#allocation5 + $0x48] sm:$0xff]
    %v52 = vld [vmem:[#allocation5 + $0x50] sm:$0xff]
    %v53 = vld [vmem:[#allocation5 + $0x58] sm:$0xff]
    %v54 = vld [vmem:[#allocation5 + $0x60] sm:$0xff]
    %v55 = vld [vmem:[#allocation5 + $0x68] sm:$0xff]
    %v56 = vld [vmem:[#allocation5 + $0x70] sm:$0xff]
    %v57 = vld [vmem:[#allocation5 + $0x78] sm:$0xff]
    %58 = vmatprep.subr.mxu0 0.0
    %59 = vmatpush1.msra.mxu0 %v57
    %60 = vmatprep.subr.mxu0 0.0
    %61 = vmatpush1.msra.mxu0 %v56
    %62 = vmatprep.subr.mxu0 0.0
    %63 = vmatpush1.msra.mxu0 %v55
    %64 = vmatprep.subr.mxu0 0.0
    %65 = vmatpush1.msra.mxu0 %v54
    %66 = vmatprep.subr.mxu0 0.0
    %67 = vmatpush1.msra.mxu0 %v53
    %68 = vmatprep.subr.mxu0 0.0
    %69 = vmatpush1.msra.mxu0 %v52
    %70 = vmatprep.subr.mxu0 0.0
    %71 = vmatpush1.msra.mxu0 %v51
    %72 = vmatprep.subr.mxu0 0.0
    %73 = vmatpush1.msra.mxu0 %v50
    %74 = vmatprep.subr.mxu0 0.0
    %75 = vmatpush1.msra.mxu0 %v49
    %76 = vmatprep.subr.mxu0 0.0
    %77 = vmatpush1.msra.mxu0 %v48
    %78 = vmatprep.subr.mxu0 0.0
    %79 = vmatpush1.msra.mxu0 %v47
    %80 = vmatprep.subr.mxu0 0.0
    %81 = vmatpush1.msra.mxu0 %v46
    %82 = vmatprep.subr.mxu0 0.0
    %83 = vmatpush1.msra.mxu0 %v45
    %84 = vmatprep.subr.mxu0 0.0
    %85 = vmatpush1.msra.mxu0 %v44
    %86 = vmatprep.subr.mxu0 0.0
    %87 = vmatpush1.msra.mxu0 %v43
    %88 = vmatprep.subr.mxu0 0.0
    %89 = vmatpush1.msra.mxu0 %v42
    %90 = vmatprep.subr.mxu0 0.0
    %91 = vmatpush2.msra.mxu0 0.0
    %92 = vmatprep.subr.mxu0 0.0
    %93 = vmatpush2.msra.mxu0 0.0
    %94 = vmatprep.subr.mxu0 0.0
    %95 = vmatpush2.msra.mxu0 0.0
    %96 = vmatprep.subr.mxu0 0.0
    %97 = vmatpush2.msra.mxu0 0.0
    %98 = vmatprep.subr.mxu0 0.0
    %99 = vmatpush2.msra.mxu0 0.0
    %100 = vmatprep.subr.mxu0 0.0
    %101 = vmatpush2.msra.mxu0 0.0
    %102 = vmatprep.subr.mxu0 0.0
    %103 = vmatpush2.msra.mxu0 0.0
    %104 = vmatprep.subr.mxu0 0.0
    %105 = vmatpush2.msra.mxu0 0.0
    %106 = vmatprep.subr.mxu0 0.0
    %107 = vmatpush2.msra.mxu0 0.0
    %108 = vmatprep.subr.mxu0 0.0
    %109 = vmatpush2.msra.mxu0 0.0
    %110 = vmatprep.subr.mxu0 0.0
    %111 = vmatpush2.msra.mxu0 0.0
    %112 = vmatprep.subr.mxu0 0.0
    %113 = vmatpush2.msra.mxu0 0.0
    %114 = vmatprep.subr.mxu0 0.0
    %115 = vmatpush2.msra.mxu0 0.0
    %116 = vmatprep.subr.mxu0 0.0
    %117 = vmatpush2.msra.mxu0 0.0
    %118 = vmatprep.subr.mxu0 0.0
    %119 = vmatpush2.msra.mxu0 0.0
    %120 = vmatprep.subr.mxu0 0.0
    %121 = vmatpush2.msra.mxu0 0.0
    %122 = vmatprep.mubr.f32.mxu0 0.0
    %123 = vmatmul.mubr.f32.gmra.mxu0 %v40
    %v124 = vpop.f32.mrf.mxu0
    %v125 = vadd.f32 0.0, %v124
    %v126 = vpop.f32.mrf.mxu0
    %127 = vmatprep.mubr.f32.mxu0 0.0
    %128 = vmatmul.mubr.f32.gmra.mxu0 %v41
    %v129 = vpop.f32.mrf.mxu0
    %v130 = vadd.f32 0.0, %v129
    %v131 = vpop.f32.mrf.mxu0
    %132 = vdwg.mxu0
    %133 = vst [vmem:[#allocation7] sm:$0xff] %v125
    %134 = vst [vmem:[#allocation7 + $0x8] sm:$0xff] %v130
    // Predicated region
    $region18: #{tpu_custom_call.1} parent=1 // pred_check
      _
    $region19: #{tpu_custom_call.1} parent=1 // pred_check_branch
      %136 = sbr.rel (0) target = $region21
    $region20: #{tpu_custom_call.1} parent=1 // pred_region
      %s138 = ssub.s32 256, 256
      %139 = vsyncadd [#allocation4], %s138
      %s140 = sshll.u32 [#allocation7], 4
      %s141 = int_to_ptr.vmem [resolvable:$true] %s140
      %146 = dma.vmem_to_hbm [thread:$0]  %s141, 256, %s2, [#allocation4], 128, 128, 8
    $region21: #{tpu_custom_call.1} parent=1 // pred_fallthru
      _
    // Predicated region
    $region22: #{tpu_custom_call.1} parent=1 // pred_check
      _
    $region23: #{tpu_custom_call.1} parent=1 // pred_check_branch
      %148 = sbr.rel (0) target = $region25
    $region24: #{tpu_custom_call.1} parent=1 // pred_region
      %149 = dma.done [#allocation4], 256
    $region25: #{tpu_custom_call.1} parent=1 // pred_fallthru
      _
    %150 = vsyncpa [#allocation3], 1
    %151 = vsyncpa [#allocation6], 1
    %152 = vsyncpa [#allocation4], 1

</llo_original>
